<compile_context>
chip_gen: v5e
topology: v5e:2x2
jax: 0.10.0
libtpu: 0.0.40
codegen_flags: <defaults>
</compile_context>

<pallas_src>
import jax
import jax.numpy as jnp
import numpy as np
from jax.experimental import pallas as pl
from jax.experimental.pallas import tpu as pltpu


def _round_up(x, m):
    return (x + m - 1) // m * m


def _choose_block_b(B, S, D, *, budget_bytes=8 * 1024 * 1024):
    """Pick a batch block TB (multiple of 8) whose double-buffered bf16 context
    block fits a conservative VMEM budget (safe on v7x's 64 MiB as well as
    v5e/v6e's 128 MiB)."""
    per_row = S * D * 2 * 2          # bf16 bytes, x2 for double buffering
    tb = max(8, (budget_bytes // max(per_row, 1)) // 8 * 8)
    tb = min(tb, _round_up(B, 8))
    # Prefer >= 2 grid steps when the batch allows it, so the "parallel" batch
    # axis can be split across the two TensorCores on v7x.
    if tb >= 16 and _round_up(B, 8) // tb < 2:
        tb = max(8, _round_up(_round_up(B, 8) // 2, 8))
    return tb


def attention_kernel(ctx_ref, wt_ref, v_ref, vb_ref, wctx_ref, attn_ref):
    tb, s, d = ctx_ref.shape
    ctx = ctx_ref[...]                                     # (TB, S, D) bf16

    # l_ctxt = tanh(context @ W.T): one flattened (TB*S, D) @ (D, D) MXU matmul
    # (W is already transposed in the wrapper), fp32 accumulation.
    h = jnp.dot(ctx.reshape(tb * s, d), wt_ref[...],
                preferred_element_type=jnp.float32)
    h = jnp.tanh(h).reshape(tb, s, d)                      # (TB, S, D) fp32

    # attn logits = l_ctxt @ V.T + b  -> contract D via VPU multiply + lane
    # reduce (no transpose of h), result lands directly as (TB, S).
    logits = jnp.sum(h * v_ref[...], axis=-1) + vb_ref[0]  # (TB, S) fp32

    # Numerically stable softmax over the source axis S.
    m = jnp.max(logits, axis=-1, keepdims=True)
    e = jnp.exp(logits - m)
    denom = jnp.sum(e, axis=-1, keepdims=True)
    p = e * pl.reciprocal(denom, approx=True)              # (TB, S) fp32
    attn_ref[...] = p.astype(attn_ref.dtype)

    # weightedContext = attn @ context, done as VPU multiply + reduce over S
    # (avoids TB separate M=1 MXU matmuls; MXU stays dedicated to the tanh GEMM).
    wctx = jnp.sum(p[:, :, None] * ctx.astype(jnp.float32), axis=1)   # (TB, D)
    wctx_ref[...] = wctx.astype(wctx_ref.dtype)


def attention_simple(context, w, v_w, v_b, *, block_b=None):
    """context: (B, S, D). Returns (weightedContext (B, D), attn (B, S))."""
    B, S, D = context.shape
    out_dtype = context.dtype

    TB = _choose_block_b(B, S, D) if block_b is None else block_b
    B_pad = _round_up(B, TB)

    # bf16 at the HBM boundary halves the dominant DMA traffic; fp32 accumulate
    # inside the kernel. Zero-pad the batch so TB divides it exactly (padded
    # rows produce finite garbage-free values and are sliced off below).
    ctx = context.astype(jnp.bfloat16)
    if B_pad != B:
        ctx = jnp.pad(ctx, ((0, B_pad - B), (0, 0), (0, 0)))

    wt = w.T.astype(jnp.bfloat16)            # pre-transposed: kernel does x @ W^T
    v = v_w.astype(jnp.float32)              # (1, D), stays fp32 (tiny)
    vb = v_b.reshape(1).astype(jnp.float32)  # scalar bias -> SMEM

    grid = (B_pad // TB,)

    # NOTE: W / V have constant index maps, so their blocks are not re-fetched
    # across grid steps; at large D they could additionally be single-buffered
    # to reclaim VMEM headroom on v7x.
    wctx, attn = pl.pallas_call(
        attention_kernel,
        grid=grid,
        in_specs=[
            pl.BlockSpec((TB, S, D), lambda b: (b, 0, 0)),               # context
            pl.BlockSpec((D, D), lambda b: (0, 0)),                      # W^T
            pl.BlockSpec((1, D), lambda b: (0, 0)),                      # V weight
            pl.BlockSpec(memory_space=pltpu.MemorySpace.SMEM),           # V bias
        ],
        out_specs=[
            pl.BlockSpec((TB, D), lambda b: (b, 0)),                     # weightedContext
            pl.BlockSpec((TB, S), lambda b: (b, 0)),                     # attn
        ],
        out_shape=[
            jax.ShapeDtypeStruct((B_pad, D), jnp.float32),
            jax.ShapeDtypeStruct((B_pad, S), jnp.float32),
        ],
        compiler_params=pltpu.CompilerParams(
            dimension_semantics=("parallel",),
            vmem_limit_bytes=48 * 1024 * 1024,
        ),
    )(ctx, wt, v, vb)

    return wctx[:B].astype(out_dtype), attn[:B].astype(out_dtype)


def reference(context, w, v_w, v_b):
    # Pure-JAX fp32 reference mirroring the PyTorch forward.
    B, S, D = context.shape
    h = jnp.tanh(context.reshape(-1, D) @ w.T)             # (B*S, D)
    logits = (h @ v_w.T + v_b).reshape(B, S)               # (B, S)
    attn = jax.nn.softmax(logits, axis=-1)
    wctx = jnp.einsum('bs,bsd->bd', attn, context)
    return wctx, attn


if __name__ == "__main__":
    B, S, D = 2, 8, 32  # batch, sourceL, dim

    key = jax.random.PRNGKey(0)
    k_ctx, k_w, k_vw, k_vb = jax.random.split(key, 4)

    context = jax.random.normal(k_ctx, (B, S, D), dtype=jnp.float32)

    # Deterministic parameter init (uniform, PyTorch-Linear-style bound 1/sqrt(fan_in)).
    bound = 1.0 / np.sqrt(D)
    w = jax.random.uniform(k_w, (D, D), minval=-bound, maxval=bound,
                           dtype=jnp.float32)
    v_w = jax.random.uniform(k_vw, (1, D), minval=-bound, maxval=bound,
                             dtype=jnp.float32)
    v_b = jax.random.uniform(k_vb, (1,), minval=-bound, maxval=bound,
                             dtype=jnp.float32)

    wctx, attn = attention_simple(context, w, v_w, v_b)
    jax.block_until_ready((wctx, attn))

    wctx_ref, attn_ref = reference(context, w, v_w, v_b)
    assert wctx.shape == (B, D) and attn.shape == (B, S)
    # bf16 MXU inputs with fp32 accumulation -> loosened tolerances.
    np.testing.assert_allclose(np.asarray(attn), np.asarray(attn_ref),
                               rtol=2e-2, atol=2e-2)
    np.testing.assert_allclose(np.asarray(wctx), np.asarray(wctx_ref),
                               rtol=2e-2, atol=2e-2)

    print("KERNEL_OK")
</pallas_src>

<mosaic_0001>
module attributes {stable_mosaic.version = 11 : i64} {
  func.func @attention_kernel(%arg0: i32, %arg1: memref<8x8x32xbf16, #tpu.memory_space<vmem>>, %arg2: memref<32x32xbf16, #tpu.memory_space<vmem>>, %arg3: memref<1x32xf32, #tpu.memory_space<vmem>>, %arg4: memref<1xf32, #tpu.memory_space<smem>>, %arg5: memref<8x32xf32, #tpu.memory_space<vmem>>, %arg6: memref<8x8xf32, #tpu.memory_space<vmem>>) attributes {dimension_semantics = [#tpu.dimension_semantics<parallel>], iteration_bounds = array<i64: 1>, scalar_prefetch = 0 : i64, scratch_operands = 0 : i64, tpu.core_type = #tpu.core_type<tc>, window_params = [{transform_indices = @transform_0, window_bounds = array<i64: 8, 8, 32>}, {pipeline_mode = #tpu.pipeline_mode<synchronous>, transform_indices = @transform_1, window_bounds = array<i64: 32, 32>}, {pipeline_mode = #tpu.pipeline_mode<synchronous>, transform_indices = @transform_2, window_bounds = array<i64: 1, 32>}, {transform_indices = @transform_3, window_bounds = array<i64: 1>}, {transform_indices = @transform_4, window_bounds = array<i64: 8, 32>}, {transform_indices = @transform_5, window_bounds = array<i64: 8, 8>}]} {
    %c0 = arith.constant 0 : index
    %c0_0 = arith.constant 0 : index
    %c0_1 = arith.constant 0 : index
    %0 = vector.load %arg1[%c0, %c0_0, %c0_1] : memref<8x8x32xbf16, #tpu.memory_space<vmem>>, vector<8x8x32xbf16>
    %1 = vector.shape_cast %0 : vector<8x8x32xbf16> to vector<64x32xbf16>
    %c0_2 = arith.constant 0 : index
    %c0_3 = arith.constant 0 : index
    %2 = vector.load %arg2[%c0_2, %c0_3] : memref<32x32xbf16, #tpu.memory_space<vmem>>, vector<32x32xbf16>
    %cst = arith.constant dense<0.000000e+00> : vector<64x32xf32>
    %3 = tpu.matmul %1, %2, %cst {dimension_numbers = #tpu.dot_dimension_numbers<[1], [0], [0], [1], [0, 0, 1, 1], [], []>} : vector<64x32xbf16>, vector<32x32xbf16>, vector<64x32xf32> -> vector<64x32xf32>
    %4 = math.tanh %3 : vector<64x32xf32>
    %5 = vector.shape_cast %4 : vector<64x32xf32> to vector<8x8x32xf32>
    %c0_4 = arith.constant 0 : index
    %c0_5 = arith.constant 0 : index
    %6 = vector.load %arg3[%c0_4, %c0_5] : memref<1x32xf32, #tpu.memory_space<vmem>>, vector<1x32xf32>
    %7 = vector.shape_cast %6 : vector<1x32xf32> to vector<1x1x32xf32>
    %8 = vector.broadcast %7 : vector<1x1x32xf32> to vector<8x8x32xf32>
    %9 = arith.mulf %5, %8 : vector<8x8x32xf32>
    %cst_6 = arith.constant dense<0.000000e+00> : vector<8x8xf32>
    %10 = vector.multi_reduction <add>, %9, %cst_6 [2] : vector<8x8x32xf32> to vector<8x8xf32>
    %c0_7 = arith.constant 0 : index
    %11 = memref.load %arg4[%c0_7] : memref<1xf32, #tpu.memory_space<smem>>
    %12 = vector.broadcast %11 : f32 to vector<8x8xf32>
    %13 = arith.addf %10, %12 : vector<8x8xf32>
    %cst_8 = arith.constant dense<0xFF800000> : vector<8xf32>
    %14 = vector.multi_reduction <maximumf>, %13, %cst_8 [1] : vector<8x8xf32> to vector<8xf32>
    %15 = vector.shape_cast %14 : vector<8xf32> to vector<8x1xf32>
    %16 = vector.broadcast %15 : vector<8x1xf32> to vector<8x8xf32>
    %17 = arith.subf %13, %16 : vector<8x8xf32>
    %18 = math.exp %17 : vector<8x8xf32>
    %cst_9 = arith.constant dense<0.000000e+00> : vector<8xf32>
    %19 = vector.multi_reduction <add>, %18, %cst_9 [1] : vector<8x8xf32> to vector<8xf32>
    %20 = vector.shape_cast %19 : vector<8xf32> to vector<8x1xf32>
    %21 = tpu.reciprocal %20 {approx = true} : vector<8x1xf32> -> vector<8x1xf32>
    %22 = vector.broadcast %21 : vector<8x1xf32> to vector<8x8xf32>
    %23 = arith.mulf %18, %22 : vector<8x8xf32>
    %c0_10 = arith.constant 0 : index
    %c0_11 = arith.constant 0 : index
    %24 = vector.load %arg6[%c0_10, %c0_11] : memref<8x8xf32, #tpu.memory_space<vmem>>, vector<8x8xf32>
    tpu.vector_store %arg6[%c0_10, %c0_11], %23 {strides = array<i32>} : memref<8x8xf32, #tpu.memory_space<vmem>>, vector<8x8xf32>,
    %25 = vector.shape_cast %23 : vector<8x8xf32> to vector<8x8x1xf32>
    %26 = arith.extf %0 : vector<8x8x32xbf16> to vector<8x8x32xf32>
    %27 = vector.broadcast %25 : vector<8x8x1xf32> to vector<8x8x32xf32>
    %28 = arith.mulf %27, %26 : vector<8x8x32xf32>
    %cst_12 = arith.constant dense<0.000000e+00> : vector<8x32xf32>
    %29 = vector.multi_reduction <add>, %28, %cst_12 [1] : vector<8x8x32xf32> to vector<8x32xf32>
    %c0_13 = arith.constant 0 : index
    %c0_14 = arith.constant 0 : index
    %30 = vector.load %arg5[%c0_13, %c0_14] : memref<8x32xf32, #tpu.memory_space<vmem>>, vector<8x32xf32>
    tpu.vector_store %arg5[%c0_13, %c0_14], %29 {strides = array<i32>} : memref<8x32xf32, #tpu.memory_space<vmem>>, vector<8x32xf32>,
    return
  }
  func.func @transform_0(%arg0: i32) -> (i32, i32, i32) {
    %c0_i32 = arith.constant 0 : i32
    %c0_i32_0 = arith.constant 0 : i32
    %c0_i32_1 = arith.constant 0 : i32
    return %arg0, %c0_i32, %c0_i32_0 : i32, i32, i32
  }
  func.func @transform_1(%arg0: i32) -> (i32, i32) {
    %c0_i32 = arith.constant 0 : i32
    %c0_i32_0 = arith.constant 0 : i32
    %c0_i32_1 = arith.constant 0 : i32
    return %c0_i32, %c0_i32_0 : i32, i32
  }
  func.func @transform_2(%arg0: i32) -> (i32, i32) {
    %c0_i32 = arith.constant 0 : i32
    %c0_i32_0 = arith.constant 0 : i32
    %c0_i32_1 = arith.constant 0 : i32
    return %c0_i32, %c0_i32_0 : i32, i32
  }
  func.func @transform_3(%arg0: i32) -> i32 {
    %c0_i32 = arith.constant 0 : i32
    %c0_i32_0 = arith.constant 0 : i32
    return %c0_i32 : i32
  }
  func.func @transform_4(%arg0: i32) -> (i32, i32) {
    %c0_i32 = arith.constant 0 : i32
    %c0_i32_0 = arith.constant 0 : i32
    return %arg0, %c0_i32 : i32, i32
  }
  func.func @transform_5(%arg0: i32) -> (i32, i32) {
    %c0_i32 = arith.constant 0 : i32
    %c0_i32_0 = arith.constant 0 : i32
    return %arg0, %c0_i32 : i32, i32
  }
}

</mosaic_0001>

<llo_original>
// kernel: tpu_custom_call.1
$region0: #{tpu_custom_call.1}
  #allocation0 [shape = 'u32[]', space=smem, size = 0x4, offset = 0x4, fixed_abs, tag = 'smem constant byte address 0x4 - core index']
  #allocation1 [shape = 'u32[72,128]{1,0:T(1,128)}', space=vmem, size = 0x9000, scoped, tag = 'internal scratch']
  #allocation2 [shape = 'f32[1]{0:T(128)S(6)}', space=smem, size = 0x200, scoped, tag = 'scoped memory for tpu_custom_call.1']
  %s0 = inlined_call_operand.hbm [shape: bf16[8,8,32], index: 0, kind: input, shape index: {}]
  %s1 = inlined_call_operand.hbm [shape: bf16[32,32], index: 1, kind: input, shape index: {}]
  %s2 = inlined_call_operand.vmem [shape: f32[1,32], index: 2, kind: input, shape index: {}]
  %s3 = inlined_call_operand.<no memory space> [shape: f32[1], index: 3, kind: input, shape index: {}]
  %s4 = inlined_call_operand.hbm [shape: f32[8,32], index: 4, kind: output, shape index: {0}]
  %s5 = inlined_call_operand.hbm [shape: f32[8,8], index: 5, kind: output, shape index: {1}]
  %6 = xla_tuple %s4, %s5
  %s7 = sld [smem:[#allocation0]]
  $region42: #{tpu_custom_call.1} parent=0
    _
  %s9 = ssub.s32 1, %s7
  %s10 = scalar_select 0, %s9, %s7
  %11 = sst [smem:[#allocation2]] %s3
  $region1: #{tpu_custom_call.1} parent=0
    #allocation3 [shape = 'u8[16384]{0}', space=vmem, size = 0x4000, scoped, tag = 'input window, operand 0, single buffered']
    #allocation4 [shape = 's32[1]{0}', space=sflag, size = 0x4, scoped, tag = 'scoped memory for tpu_custom_call.1']
    #allocation5 [shape = 's32[1]{0}', space=sflag, size = 0x4, scoped, tag = 'scoped memory for tpu_custom_call.1']
    #allocation6 [shape = 'u8[8192]{0}', space=vmem, size = 0x2000, scoped, tag = 'input window, operand 1, single buffered']
    #allocation7 [shape = 's32[1]{0}', space=sflag, size = 0x4, scoped, tag = 'scoped memory for tpu_custom_call.1']
    #allocation8 [shape = 'u8[4096]{0}', space=vmem, size = 0x1000, scoped, tag = 'output window, operand 0, single buffered']
    #allocation9 [shape = 'u8[4096]{0}', space=vmem, size = 0x1000, scoped, tag = 'output window, operand 1, single buffered']
    #allocation10 [shape = 's32[1]{0}', space=sflag, size = 0x4, scoped, tag = 'scoped memory for tpu_custom_call.1']
    %12 = vsyncpa [#allocation4], 0
    %13 = vsyncpa [#allocation7], 0
    %14 = vsyncpa [#allocation5], 0
    %15 = vsyncpa [#allocation10], 0
    // Predicated region
    $region2: #{tpu_custom_call.1} parent=1 // pred_check
      _
    $region3: #{tpu_custom_call.1} parent=1 // pred_check_branch
      %17 = sbr.rel (0) target = $region5
    $region4: #{tpu_custom_call.1} parent=1 // pred_region
      %19 = vsyncadd [#allocation4], 0
      %s20 = sshll.u32 %s0, 4
      %s21 = int_to_ptr.hbm [resolvable:$true] %s20
      %s22 = sshll.u32 [#allocation3], 4
      %s23 = int_to_ptr.vmem [resolvable:$true] %s22
      %28 = dma.hbm_to_vmem [thread:$0]  %s21, 512, %s23, [#allocation4], 64, 64, 4
    $region5: #{tpu_custom_call.1} parent=1 // pred_fallthru
      _
    // Predicated region
    $region6: #{tpu_custom_call.1} parent=1 // pred_check
      _
    $region7: #{tpu_custom_call.1} parent=1 // pred_check_branch
      %30 = sbr.rel (0) target = $region9
    $region8: #{tpu_custom_call.1} parent=1 // pred_region
      %32 = vsyncadd [#allocation7], 0
      %s33 = sshll.u32 %s1, 4
      %s34 = int_to_ptr.hbm [resolvable:$true] %s33
      %s35 = sshll.u32 [#allocation6], 4
      %s36 = int_to_ptr.vmem [resolvable:$true] %s35
      %41 = dma.hbm_to_vmem [thread:$0]  %s34, 256, %s36, [#allocation7], 64, 64, 4
    $region9: #{tpu_custom_call.1} parent=1 // pred_fallthru
      _
    // Predicated region
    $region10: #{tpu_custom_call.1} parent=1 // pred_check
      _
    $region11: #{tpu_custom_call.1} parent=1 // pred_check_branch
      %43 = sbr.rel (0) target = $region13
    $region12: #{tpu_custom_call.1} parent=1 // pred_region
      _
    $region13: #{tpu_custom_call.1} parent=1 // pred_fallthru
      _
    // Predicated region
    $region14: #{tpu_custom_call.1} parent=1 // pred_check
      _
    $region15: #{tpu_custom_call.1} parent=1 // pred_check_branch
      %45 = sbr.rel (0) target = $region17
    $region16: #{tpu_custom_call.1} parent=1 // pred_region
      _
    $region17: #{tpu_custom_call.1} parent=1 // pred_fallthru
      _
    // Predicated region
    $region18: #{tpu_custom_call.1} parent=1 // pred_check
      _
    $region19: #{tpu_custom_call.1} parent=1 // pred_check_branch
      %47 = sbr.rel (0) target = $region21
    $region20: #{tpu_custom_call.1} parent=1 // pred_region
      %49 = dma.done [#allocation4], 512
    $region21: #{tpu_custom_call.1} parent=1 // pred_fallthru
      _
    // Predicated region
    $region22: #{tpu_custom_call.1} parent=1 // pred_check
      _
    $region23: #{tpu_custom_call.1} parent=1 // pred_check_branch
      %51 = sbr.rel (0) target = $region25
    $region24: #{tpu_custom_call.1} parent=1 // pred_region
      %53 = dma.done [#allocation7], 256
    $region25: #{tpu_custom_call.1} parent=1 // pred_fallthru
      _
    %v55 = vld [vmem:[#allocation3] sm:$0xf]
    %v56 = vld [vmem:[#allocation3 + $0x4] sm:$0xf]
    %v57 = vld [vmem:[#allocation3 + $0x8] sm:$0xf]
    %v58 = vld [vmem:[#allocation3 + $0xc] sm:$0xf]
    %v59 = vld [vmem:[#allocation3 + $0x10] sm:$0xf]
    %v60 = vld [vmem:[#allocation3 + $0x14] sm:$0xf]
    %v61 = vld [vmem:[#allocation3 + $0x18] sm:$0xf]
    %v62 = vld [vmem:[#allocation3 + $0x1c] sm:$0xf]
    %v63 = vld [vmem:[#allocation6] sm:$0xf]
    %v64 = vld [vmem:[#allocation6 + $0x4] sm:$0xf]
    %v65 = vld [vmem:[#allocation6 + $0x8] sm:$0xf]
    %v66 = vld [vmem:[#allocation6 + $0xc] sm:$0xf]
    %v75 = vunpack.c.l.b16 %v55
    %v76 = vunpack.c.l.b16 %v56
    %v77 = vunpack.c.l.b16 %v57
    %v78 = vunpack.c.l.b16 %v58
    %v79 = vunpack.c.l.b16 %v59
    %v80 = vunpack.c.l.b16 %v60
    %v81 = vunpack.c.l.b16 %v61
    %v82 = vunpack.c.l.b16 %v62
    %v83 = vpack.c.b16 %v76, %v75
    %v84 = vpack.c.b16 %v78, %v77
    %v85 = vpack.c.b16 %v80, %v79
    %v86 = vpack.c.b16 %v82, %v81
    %v91 = vunpack.c.l.b16 %v63
    %v92 = vunpack.c.l.b16 %v64
    %v93 = vunpack.c.l.b16 %v65
    %v94 = vunpack.c.l.b16 %v66
    %v95 = vpack.c.b16 %v92, %v91
    %v96 = vpack.c.b16 %v94, %v93
    %vm99 = vcmask 261120
    %v101 = vsel %vm99, %v83, 0
    %v104 = vsel %vm99, %v84, 0
    %v107 = vsel %vm99, %v85, 0
    %v110 = vsel %vm99, %v86, 0
    %112 = vmatpush.bf16.msra.mxu0 0
    %113 = vmatpush.bf16.msra.mxu0 0
    %114 = vmatpush.bf16.msra.mxu0 0
    %115 = vmatpush.bf16.msra.mxu0 0
    %116 = vmatpush.bf16.msra.mxu0 0
    %117 = vmatpush.bf16.msra.mxu0 0
    %118 = vmatpush.bf16.msra.mxu0 %v96
    %119 = vmatpush.bf16.msra.mxu0 %v95
    %120 = vmatmul.bf16.gmra.mxu0 %v101
    %v121 = vpop.f32.mrf.mxu0
    %v122 = vadd.f32 0.0, %v121
    %v123 = vpop.f32.mrf.mxu0
    %v124 = vadd.f32 0.0, %v123
    %125 = vmatmul.bf16.gmra.mxu0 %v104
    %v126 = vpop.f32.mrf.mxu0
    %v127 = vadd.f32 0.0, %v126
    %v128 = vpop.f32.mrf.mxu0
    %v129 = vadd.f32 0.0, %v128
    %130 = vmatmul.bf16.gmra.mxu0 %v107
    %v131 = vpop.f32.mrf.mxu0
    %v132 = vadd.f32 0.0, %v131
    %v133 = vpop.f32.mrf.mxu0
    %v134 = vadd.f32 0.0, %v133
    %135 = vmatmul.bf16.gmra.mxu0 %v110
    %v136 = vpop.f32.mrf.mxu0
    %v137 = vadd.f32 0.0, %v136
    %v138 = vpop.f32.mrf.mxu0
    %v139 = vadd.f32 0.0, %v138
    %140 = vdwg.mxu0
    %v141 = vtanh.pop %v122
    %v142 = vtanh.pop %v124
    %v143 = vtanh.pop %v127
    %v144 = vtanh.pop %v129
    %v145 = vtanh.pop %v132
    %v146 = vtanh.pop %v134
    %v147 = vtanh.pop %v137
    %v148 = vtanh.pop %v139
    %v149 = vld [vmem:[%s2] sm:$0x1]
    %v151 = vperm.slane %v149, 0
    %v153 = vmul.f32 %v141, %v151
    %v154 = vmul.f32 %v142, %v151
    %v155 = vmul.f32 %v143, %v151
    %v156 = vmul.f32 %v144, %v151
    %v157 = vmul.f32 %v145, %v151
    %v158 = vmul.f32 %v146, %v151
    %v159 = vmul.f32 %v147, %v151
    %v160 = vmul.f32 %v148, %v151
    %v161 = vsel %vm99, %v153, 0.0
    %162 = vadd.xlane.f32.xlu0 %v161
    %v163 = vpop.xlane.xlu0 %162
    %v164 = vsel %vm99, %v154, 0.0
    %165 = vadd.xlane.f32.xlu0 %v164
    %v166 = vpop.xlane.xlu0 %165
    %v167 = vsel %vm99, %v155, 0.0
    %168 = vadd.xlane.f32.xlu0 %v167
    %v169 = vpop.xlane.xlu0 %168
    %v170 = vsel %vm99, %v156, 0.0
    %171 = vadd.xlane.f32.xlu0 %v170
    %v172 = vpop.xlane.xlu0 %171
    %v173 = vsel %vm99, %v157, 0.0
    %174 = vadd.xlane.f32.xlu0 %v173
    %v175 = vpop.xlane.xlu0 %174
    %v176 = vsel %vm99, %v158, 0.0
    %177 = vadd.xlane.f32.xlu0 %v176
    %v178 = vpop.xlane.xlu0 %177
    %v179 = vsel %vm99, %v159, 0.0
    %180 = vadd.xlane.f32.xlu0 %v179
    %v181 = vpop.xlane.xlu0 %180
    %v182 = vsel %vm99, %v160, 0.0
    %183 = vadd.xlane.f32.xlu0 %v182
    %v184 = vpop.xlane.xlu0 %183
    %s185 = sld [smem:[#allocation2]]
    %v186 = vstv %s185
    %v187 = vadd.f32 %v163, %v186
    %v188 = vadd.f32 %v166, %v186
    %v189 = vadd.f32 %v169, %v186
    %v190 = vadd.f32 %v172, %v186
    %v191 = vadd.f32 %v175, %v186
    %v192 = vadd.f32 %v178, %v186
    %v193 = vadd.f32 %v181, %v186
    %v194 = vadd.f32 %v184, %v186
    %v203 = vlaneseq
    %v204 = vand.u32 %v203, 127
    %v205 = vperm.slane %v187, %v204
    %v206 = vperm.slane %v188, %v204
    %v207 = vperm.slane %v189, %v204
    %v208 = vperm.slane %v190, %v204
    %v209 = vperm.slane %v191, %v204
    %v210 = vperm.slane %v192, %v204
    %v211 = vperm.slane %v193, %v204
    %v212 = vperm.slane %v194, %v204
    %vm213 = vcmask 1041409
    %v214 = vsel %vm213, %v206, %v205
    %vm215 = vcmask 1042434
    %v216 = vsel %vm215, %v207, %v214
    %vm217 = vcmask 1043459
    %v218 = vsel %vm217, %v208, %v216
    %vm219 = vcmask 1044484
    %v220 = vsel %vm219, %v209, %v218
    %vm221 = vcmask 1045509
    %v222 = vsel %vm221, %v210, %v220
    %vm223 = vcmask 1046534
    %v224 = vsel %vm223, %v211, %v222
    %vm225 = vcmask 1047559
    %v226 = vsel %vm225, %v212, %v224
    %vm228 = vcmask 64512
    %v229 = vsel %vm228, %v226, -inf
    %230 = vmax.xlane.f32.xlu0 %v229
    %v231 = vpop.xlane.xlu0 %230
    %v233 = vperm.slane %v231, 0
    %v234 = vperm.slane %v231, 1
    %v235 = vperm.slane %v231, 2
    %v236 = vperm.slane %v231, 3
    %v237 = vperm.slane %v231, 4
    %v238 = vperm.slane %v231, 5
    %v239 = vperm.slane %v231, 6
    %v240 = vperm.slane %v231, 7
    %v249 = vsub.f32 %v187, %v233
    %v250 = vsub.f32 %v188, %v234
    %v251 = vsub.f32 %v189, %v235
    %v252 = vsub.f32 %v190, %v236
    %v253 = vsub.f32 %v191, %v237
    %v254 = vsub.f32 %v192, %v238
    %v255 = vsub.f32 %v193, %v239
    %v256 = vsub.f32 %v194, %v240
    %v257 = vmul.f32 %v249, 1.442695
    %v258 = vpow.pop %v257
    %v259 = vmul.f32 %v250, 1.442695
    %v260 = vpow.pop %v259
    %v261 = vmul.f32 %v251, 1.442695
    %v262 = vpow.pop %v261
    %v263 = vmul.f32 %v252, 1.442695
    %v264 = vpow.pop %v263
    %v265 = vmul.f32 %v253, 1.442695
    %v266 = vpow.pop %v265
    %v267 = vmul.f32 %v254, 1.442695
    %v268 = vpow.pop %v267
    %v269 = vmul.f32 %v255, 1.442695
    %v270 = vpow.pop %v269
    %v271 = vmul.f32 %v256, 1.442695
    %v272 = vpow.pop %v271
    %281 = vset.pattern.permute.xlu0 0
    %282 = vperm.xlu0 %281, %v258
    %v283 = vpop.permute.xlu0 %282
    %284 = vset.pattern.permute.xlu0 0
    %285 = vperm.xlu0 %284, %v260
    %v286 = vpop.permute.xlu0 %285
    %287 = vset.pattern.permute.xlu0 0
    %288 = vperm.xlu0 %287, %v262
    %v289 = vpop.permute.xlu0 %288
    %290 = vset.pattern.permute.xlu0 0
    %291 = vperm.xlu0 %290, %v264
    %v292 = vpop.permute.xlu0 %291
    %293 = vset.pattern.permute.xlu0 0
    %294 = vperm.xlu0 %293, %v266
    %v295 = vpop.permute.xlu0 %294
    %296 = vset.pattern.permute.xlu0 0
    %297 = vperm.xlu0 %296, %v268
    %v298 = vpop.permute.xlu0 %297
    %299 = vset.pattern.permute.xlu0 0
    %300 = vperm.xlu0 %299, %v270
    %v301 = vpop.permute.xlu0 %300
    %302 = vset.pattern.permute.xlu0 0
    %303 = vperm.xlu0 %302, %v272
    %v304 = vpop.permute.xlu0 %303
    %v305 = vperm.slane %v283, %v204
    %v306 = vperm.slane %v286, %v204
    %v307 = vperm.slane %v289, %v204
    %v308 = vperm.slane %v292, %v204
    %v309 = vperm.slane %v295, %v204
    %v310 = vperm.slane %v298, %v204
    %v311 = vperm.slane %v301, %v204
    %v312 = vperm.slane %v304, %v204
    %v313 = vsel %vm213, %v306, %v305
    %v314 = vsel %vm215, %v307, %v313
    %v315 = vsel %vm217, %v308, %v314
    %v316 = vsel %vm219, %v309, %v315
    %v317 = vsel %vm221, %v310, %v316
    %v318 = vsel %vm223, %v311, %v317
    %v319 = vsel %vm225, %v312, %v318
    %v321 = vsel %vm228, %v319, 0.0
    %322 = vadd.xlane.f32.xlu0 %v321
    %v323 = vpop.xlane.xlu0 %322
    %v324 = vrcp.pop %v323
    %v326 = vperm.slane %v324, 0
    %v327 = vperm.slane %v324, 1
    %v328 = vperm.slane %v324, 2
    %v329 = vperm.slane %v324, 3
    %v330 = vperm.slane %v324, 4
    %v331 = vperm.slane %v324, 5
    %v332 = vperm.slane %v324, 6
    %v333 = vperm.slane %v324, 7
    %v342 = vmul.f32 %v258, %v326
    %v343 = vmul.f32 %v260, %v327
    %v344 = vmul.f32 %v262, %v328
    %v345 = vmul.f32 %v264, %v329
    %v346 = vmul.f32 %v266, %v330
    %v347 = vmul.f32 %v268, %v331
    %v348 = vmul.f32 %v270, %v332
    %v349 = vmul.f32 %v272, %v333
    %358 = vset.pattern.permute.xlu0 0
    %359 = vperm.xlu0 %358, %v342
    %v360 = vpop.permute.xlu0 %359
    %361 = vset.pattern.permute.xlu0 0
    %362 = vperm.xlu0 %361, %v343
    %v363 = vpop.permute.xlu0 %362
    %364 = vset.pattern.permute.xlu0 0
    %365 = vperm.xlu0 %364, %v344
    %v366 = vpop.permute.xlu0 %365
    %367 = vset.pattern.permute.xlu0 0
    %368 = vperm.xlu0 %367, %v345
    %v369 = vpop.permute.xlu0 %368
    %370 = vset.pattern.permute.xlu0 0
    %371 = vperm.xlu0 %370, %v346
    %v372 = vpop.permute.xlu0 %371
    %373 = vset.pattern.permute.xlu0 0
    %374 = vperm.xlu0 %373, %v347
    %v375 = vpop.permute.xlu0 %374
    %376 = vset.pattern.permute.xlu0 0
    %377 = vperm.xlu0 %376, %v348
    %v378 = vpop.permute.xlu0 %377
    %379 = vset.pattern.permute.xlu0 0
    %380 = vperm.xlu0 %379, %v349
    %v381 = vpop.permute.xlu0 %380
    %v382 = vperm.slane %v360, %v204
    %v383 = vperm.slane %v363, %v204
    %v384 = vperm.slane %v366, %v204
    %v385 = vperm.slane %v369, %v204
    %v386 = vperm.slane %v372, %v204
    %v387 = vperm.slane %v375, %v204
    %v388 = vperm.slane %v378, %v204
    %v389 = vperm.slane %v381, %v204
    %v390 = vsel %vm213, %v383, %v382
    %v391 = vsel %vm215, %v384, %v390
    %v392 = vsel %vm217, %v385, %v391
    %v393 = vsel %vm219, %v386, %v392
    %v394 = vsel %vm221, %v387, %v393
    %v395 = vsel %vm223, %v388, %v394
    %v396 = vsel %vm225, %v389, %v395
    %398 = vst.msk [vmem:[#allocation9] sm:$0xff] %vm228, %v396
    %v399 = vunpack.c.l.bf16 %v55
    %v400 = vunpack.c.l.bf16 %v56
    %v401 = vunpack.c.l.bf16 %v57
    %v402 = vunpack.c.l.bf16 %v58
    %v403 = vunpack.c.l.bf16 %v59
    %v404 = vunpack.c.l.bf16 %v60
    %v405 = vunpack.c.l.bf16 %v61
    %v406 = vunpack.c.l.bf16 %v62
    %v415 = vmul.f32 %v360, %v399
    %v416 = vmul.f32 %v363, %v400
    %v417 = vmul.f32 %v366, %v401
    %v418 = vmul.f32 %v369, %v402
    %v419 = vmul.f32 %v372, %v403
    %v420 = vmul.f32 %v375, %v404
    %v421 = vmul.f32 %v378, %v405
    %v422 = vmul.f32 %v381, %v406
    %v423 = vsel %vm99, %v415, 0.0
    %v424 = vrot.slane %v423, 4
    %v425 = vadd.f32 %v423, %v424
    %v426 = vrot.slane %v425, 2
    %v427 = vadd.f32 %v425, %v426
    %v428 = vrot.slane %v427, 1
    %v429 = vadd.f32 %v427, %v428
    %v430 = vsel %vm99, %v416, 0.0
    %v431 = vrot.slane %v430, 4
    %v432 = vadd.f32 %v430, %v431
    %v433 = vrot.slane %v432, 2
    %v434 = vadd.f32 %v432, %v433
    %v435 = vrot.slane %v434, 1
    %v436 = vadd.f32 %v434, %v435
    %v437 = vsel %vm99, %v417, 0.0
    %v438 = vrot.slane %v437, 4
    %v439 = vadd.f32 %v437, %v438
    %v440 = vrot.slane %v439, 2
    %v441 = vadd.f32 %v439, %v440
    %v442 = vrot.slane %v441, 1
    %v443 = vadd.f32 %v441, %v442
    %v444 = vsel %vm99, %v418, 0.0
    %v445 = vrot.slane %v444, 4
    %v446 = vadd.f32 %v444, %v445
    %v447 = vrot.slane %v446, 2
    %v448 = vadd.f32 %v446, %v447
    %v449 = vrot.slane %v448, 1
    %v450 = vadd.f32 %v448, %v449
    %v451 = vsel %vm99, %v419, 0.0
    %v452 = vrot.slane %v451, 4
    %v453 = vadd.f32 %v451, %v452
    %v454 = vrot.slane %v453, 2
    %v455 = vadd.f32 %v453, %v454
    %v456 = vrot.slane %v455, 1
    %v457 = vadd.f32 %v455, %v456
    %v458 = vsel %vm99, %v420, 0.0
    %v459 = vrot.slane %v458, 4
    %v460 = vadd.f32 %v458, %v459
    %v461 = vrot.slane %v460, 2
    %v462 = vadd.f32 %v460, %v461
    %v463 = vrot.slane %v462, 1
    %v464 = vadd.f32 %v462, %v463
    %v465 = vsel %vm99, %v421, 0.0
    %v466 = vrot.slane %v465, 4
    %v467 = vadd.f32 %v465, %v466
    %v468 = vrot.slane %v467, 2
    %v469 = vadd.f32 %v467, %v468
    %v470 = vrot.slane %v469, 1
    %v471 = vadd.f32 %v469, %v470
    %v472 = vsel %vm99, %v422, 0.0
    %v473 = vrot.slane %v472, 4
    %v474 = vadd.f32 %v472, %v473
    %v475 = vrot.slane %v474, 2
    %v476 = vadd.f32 %v474, %v475
    %v477 = vrot.slane %v476, 1
    %v478 = vadd.f32 %v476, %v477
    %v487 = vsel %vm213, %v436, %v429
    %v488 = vsel %vm215, %v443, %v487
    %v489 = vsel %vm217, %v450, %v488
    %v490 = vsel %vm219, %v457, %v489
    %v491 = vsel %vm221, %v464, %v490
    %v492 = vsel %vm223, %v471, %v491
    %v493 = vsel %vm225, %v478, %v492
    %495 = vst.msk [vmem:[#allocation8] sm:$0xff] %vm99, %v493
    // Predicated region
    $region26: #{tpu_custom_call.1} parent=1 // pred_check
      _
    $region27: #{tpu_custom_call.1} parent=1 // pred_check_branch
      %497 = sbr.rel (0) target = $region29
    $region28: #{tpu_custom_call.1} parent=1 // pred_region
      %499 = vsyncadd [#allocation5], 0
      %s501 = sshll.u32 [#allocation8], 4
      %s502 = int_to_ptr.vmem [resolvable:$true] %s501
      %s503 = sshll.u32 %s4, 4
      %s504 = int_to_ptr.hbm [resolvable:$true] %s503
      %506 = dma.vmem_to_hbm [thread:$0]  %s502, 128, %s504, [#allocation5]
    $region29: #{tpu_custom_call.1} parent=1 // pred_fallthru
      _
    // Predicated region
    $region30: #{tpu_custom_call.1} parent=1 // pred_check
      _
    $region31: #{tpu_custom_call.1} parent=1 // pred_check_branch
      %508 = sbr.rel (0) target = $region33
    $region32: #{tpu_custom_call.1} parent=1 // pred_region
      %510 = vsyncadd [#allocation10], 0
      %s512 = sshll.u32 [#allocation9], 4
      %s513 = int_to_ptr.vmem [resolvable:$true] %s512
      %s514 = sshll.u32 %s5, 4
      %s515 = int_to_ptr.hbm [resolvable:$true] %s514
      %517 = dma.vmem_to_hbm [thread:$0]  %s513, 128, %s515, [#allocation10]
    $region33: #{tpu_custom_call.1} parent=1 // pred_fallthru
      _
    // Predicated region
    $region34: #{tpu_custom_call.1} parent=1 // pred_check
      _
    $region35: #{tpu_custom_call.1} parent=1 // pred_check_branch
      %519 = sbr.rel (0) target = $region37
    $region36: #{tpu_custom_call.1} parent=1 // pred_region
      %521 = dma.done [#allocation5], 128
    $region37: #{tpu_custom_call.1} parent=1 // pred_fallthru
      _
    // Predicated region
    $region38: #{tpu_custom_call.1} parent=1 // pred_check
      _
    $region39: #{tpu_custom_call.1} parent=1 // pred_check_branch
      %523 = sbr.rel (0) target = $region41
    $region40: #{tpu_custom_call.1} parent=1 // pred_region
      %525 = dma.done [#allocation10], 128
    $region41: #{tpu_custom_call.1} parent=1 // pred_fallthru
      _
    %526 = vsyncpa [#allocation4], 1
    %527 = vsyncpa [#allocation7], 1
    %528 = vsyncpa [#allocation5], 1
    %529 = vsyncpa [#allocation10], 1

</llo_original>
